<compile_context>
chip_gen: v7x
topology: tpu7x:2x2x1
jax: 0.10.0
libtpu: 0.0.40
codegen_flags: <defaults>
</compile_context>

<pallas_src>
import functools

import numpy as np
import jax
import jax.numpy as jnp
from jax import lax
from jax.experimental import pallas as pl
from jax.experimental.pallas import tpu as pltpu

_PAD_LABEL = -2        # never produced by the sampler (ignore=-1 filtered, text labels >= 0)
_INV_TEMP = 1.0 / 0.07


def _device_kind():
    try:
        return jax.devices()[0].device_kind.lower()
    except Exception:
        return ""


def _supports_bf16_eup():
    """bf16 transcendental path exists on v6e/v7x; v5e and older do not."""
    kind = _device_kind()
    if "tpu" not in kind:
        return False
    return not any(v in kind for v in ("v2", "v3", "v4", "v5"))


def _default_tile_m():
    """TM=256 only on v6e (128 MiB VMEM, 256-row MXU); 128 on v7x/v5e/others."""
    kind = _device_kind()
    if "tpu" in kind and "v6" in kind:
        return 256
    return 128


# ----------------------------------------------------------------------------
# Kernel 1: per-row L2 normalization of the anchors + bf16 cast.
# ----------------------------------------------------------------------------
def _normalize_kernel(a_ref, o_ref):
    a = a_ref[...].astype(jnp.float32)                              # (TM, C)
    sq = jnp.sum(a * a, axis=1, keepdims=True)
    # F.normalize(p=2, eps=1e-12): x / max(||x||, 1e-12) == x * rsqrt(max(||x||^2, 1e-24))
    inv = lax.rsqrt(jnp.maximum(sq, 1e-24))
    o_ref[...] = (a * inv).astype(jnp.bfloat16)


# ----------------------------------------------------------------------------
# Kernel 2: one row-tile of the supervised contrastive loss.
#   rowa_ref  : (TM, C)  bf16  normalized anchors for this tile's rows
#   colat_ref : (C, Np)  bf16  full normalized anchor set, pre-transposed, VMEM resident
#   trow_ref  : (TM, 1)  int32 labels of this tile's rows
#   tcol_ref  : (1, Np)  int32 labels of all anchors (pad = _PAD_LABEL)
#   out_ref   : (1, TM)  f32   per-row  valid * mean_log_prob_pos  (lane-dense)
# ----------------------------------------------------------------------------
def _contrastive_tile_kernel(rowa_ref, colat_ref, trow_ref, tcol_ref, out_ref,
                             *, use_bf16_transcendental):
    i = pl.program_id(0)
    tm = rowa_ref.shape[0]
    npad = colat_ref.shape[1]

    # sim = (rows @ colsT) / 0.07 -- bf16 operands, f32 MXU accumulation,
    # lane-dense N dimension (Np multiple of 128).
    sim = jnp.dot(rowa_ref[...], colat_ref[...],
                  preferred_element_type=jnp.float32) * _INV_TEMP   # (TM, Np)

    t_row = trow_ref[...]                                           # (TM, 1)
    t_col = tcol_ref[...]                                           # (1, Np)
    col_valid = t_col != _PAD_LABEL                                 # (1, Np) bool
    same = t_row == t_col                                           # (TM, Np) bool

    # Per-tile diagonal mask: (TM,1) row iota vs (TM,Np) column iota.
    row_ids = lax.broadcasted_iota(jnp.int32, (tm, 1), 0) + i * tm  # (TM, 1)
    col_ids = lax.broadcasted_iota(jnp.int32, (tm, npad), 1)        # (TM, Np)
    is_diag = col_ids == row_ids

    pos = same & col_valid & jnp.logical_not(is_diag)               # positives (no diagonal)
    neg = jnp.logical_not(same) & col_valid                         # negatives

    # Row max over valid columns only (stabilizer; cancels analytically).
    logits_max = jnp.max(jnp.where(col_valid, sim, -1e30), axis=1, keepdims=True)
    logits = sim - logits_max

    if use_bf16_transcendental:
        exp_logits = jnp.exp(logits.astype(jnp.bfloat16)).astype(jnp.float32)
    else:
        exp_logits = jnp.exp(logits)

    neg_logits = jnp.sum(jnp.where(neg, exp_logits, 0.0), axis=1, keepdims=True)

    if use_bf16_transcendental:
        log_denom = jnp.log((exp_logits + neg_logits).astype(jnp.bfloat16)
                            ).astype(jnp.float32)                   # (TM, Np)
    else:
        log_denom = jnp.log(exp_logits + neg_logits)                # (TM, Np)

    # Fused positive reduction: one select + one cross-lane sum.
    pos_sum = jnp.sum(jnp.where(pos, logits - log_denom, 0.0), axis=1, keepdims=True)
    pos_cnt = jnp.sum(jnp.where(pos, 1.0, 0.0), axis=1, keepdims=True)
    mean_log_prob_pos = pos_sum / (pos_cnt + 1e-5)                  # exact divide

    row_valid = t_row != _PAD_LABEL                                 # (TM, 1) bool
    per_row = jnp.where(row_valid, mean_log_prob_pos, 0.0).astype(jnp.float32)
    out_ref[...] = per_row.reshape(1, tm)                           # lane-dense store


def contrastive_loss_pallas(anchor, target, *, tile_m=None, use_bf16_transcendental=None):
    """anchor: (N, C) float32, target: (N,) int32 -> scalar f32 loss."""
    if tile_m is None:
        tile_m = _default_tile_m()
    if use_bf16_transcendental is None:
        use_bf16_transcendental = _supports_bf16_eup()

    anchor = jnp.asarray(anchor, jnp.float32)
    target = jnp.asarray(target, jnp.int32)
    n, c = anchor.shape
    npad = max(tile_m, ((n + tile_m - 1) // tile_m) * tile_m)
    num_tiles = npad // tile_m

    a_pad = jnp.zeros((npad, c), jnp.float32).at[:n].set(anchor)
    t_pad = jnp.full((npad,), _PAD_LABEL, jnp.int32).at[:n].set(target)

    # --- normalize + bf16 cast (Pallas) ---
    a_norm = pl.pallas_call(
        _normalize_kernel,
        out_shape=jax.ShapeDtypeStruct((npad, c), jnp.bfloat16),
        grid=(num_tiles,),
        in_specs=[pl.BlockSpec((tile_m, c), lambda i: (i, 0))],
        out_specs=pl.BlockSpec((tile_m, c), lambda i: (i, 0)),
        compiler_params=pltpu.CompilerParams(
            dimension_semantics=("parallel",)),
    )(a_pad)

    # Pre-transposed resident operand: one cheap XLA transpose of (Np, C) bf16.
    a_norm_t = a_norm.T                                              # (C, Np)

    t_row = t_pad.reshape(npad, 1)
    t_col = t_pad.reshape(1, npad)

    cost = pl.CostEstimate(
        flops=2 * npad * npad * c,                # similarity matmul
        transcendentals=2 * npad * npad,          # exp + log per pair
        bytes_accessed=(npad * c * 2              # bf16 row tiles (streamed once)
                        + npad * c * 2            # bf16 resident transposed cols
                        + npad * 4 * 2            # int32 labels (two views)
                        + npad * 4))              # lane-dense f32 output

    kernel = functools.partial(_contrastive_tile_kernel,
                               use_bf16_transcendental=use_bf16_transcendental)

    # ~4 live (TM,Np) f32 slabs per tile + double-buffered inputs:
    # 32 MiB fits TM=128 on v7x/v5e; 64 MiB for TM=256 on v6e (128 MiB physical).
    vmem_limit = (64 if tile_m >= 256 else 32) * 1024 * 1024

    per_row = pl.pallas_call(
        kernel,
        out_shape=jax.ShapeDtypeStruct((1, npad), jnp.float32),
        grid=(num_tiles,),
        in_specs=[
            pl.BlockSpec((tile_m, c), lambda i: (i, 0)),   # this tile's normalized rows
            pl.BlockSpec((c, npad), lambda i: (0, 0)),     # full transposed set, stays resident
            pl.BlockSpec((tile_m, 1), lambda i: (i, 0)),   # this tile's labels (column view)
            pl.BlockSpec((1, npad), lambda i: (0, 0)),     # all labels (row view)
        ],
        out_specs=pl.BlockSpec((1, tile_m), lambda i: (0, i)),   # lane-dense output row
        compiler_params=pltpu.CompilerParams(
            dimension_semantics=("parallel",),             # independent row tiles -> both v7x TCs
            vmem_limit_bytes=vmem_limit),
        cost_estimate=cost,
    )(a_norm, a_norm_t, t_row, t_col)

    # Final (trivial) reduction: mean over the n real anchor rows, negate.
    return -jnp.sum(per_row) / jnp.float32(n)


# ----------------------------------------------------------------------------
# Glue (numpy): label interpolation, anchor sampling, concatenation.
# ----------------------------------------------------------------------------
def nearest_resize_3d(x, size):
    """PyTorch F.interpolate(mode='nearest') for 5-D NCDHW input (downsample)."""
    _, _, D, H, W = x.shape
    d, h, w = size
    di = (np.arange(d) * D) // d
    hi = (np.arange(h) * H) // h
    wi = (np.arange(w) * W) // w
    return x[:, :, di][:, :, :, hi][:, :, :, :, wi]


class ContrastiveLossPallas:
    def __init__(self, ignore_index=-1, prompt_num=2):
        self.ignore_label = ignore_index
        self.prompt_num = prompt_num

    def sample_anchor(self, features, label, n_view, rng):
        # features: (B, L, C) numpy, label: (B, L) numpy int
        # TODO(synk): torch.unique/nonzero/randperm are dynamic-shape, data-dependent
        #             ops with no clean Pallas equivalent; done on host.
        batch_size = features.shape[0]
        anc_features, anc_labels = [], []
        total_classes = 0
        for i in range(batch_size):
            i_label = label[i]
            i_classes = [c for c in np.unique(i_label) if c != self.ignore_label]
            total_classes += len(i_classes)
            for cls_id in i_classes:
                indices = np.nonzero(i_label == cls_id)[0]
                if indices.shape[0] > n_view:
                    keep = rng.permutation(indices.shape[0])[:n_view]
                    indices = indices[keep]
                anc_features.append(features[i][indices])
                anc_labels.append(np.full((indices.shape[0],), cls_id, dtype=np.int64))
        if total_classes == 0:
            return None, None
        return np.concatenate(anc_features, axis=0), np.concatenate(anc_labels, axis=0)

    def forward(self, features_embedding_all, label, text_embedding_all,
                entropy_map, threshold, sample_num=10, rng=None):
        if rng is None:
            rng = np.random.RandomState(0)
        n_view_list = [int(x * sample_num) for x in [4, 2, 1]]

        mask = entropy_map > threshold
        pseudo_label = label[6:].copy()
        pseudo_label[mask] = self.ignore_label
        label = np.concatenate([label[:6], pseudo_label], axis=0)

        loss = jnp.float32(0.0)
        for features, text_embedding, n_view in zip(
                features_embedding_all, text_embedding_all, n_view_list):
            i_label = nearest_resize_3d(
                label.astype(np.float32),
                (features.shape[2], features.shape[3], features.shape[4])
            ).astype(np.int64)
            assert i_label.shape[-1] == features.shape[-1]

            batch_size = features.shape[0]
            i_label = i_label.reshape(batch_size, -1)
            feats = np.transpose(features, (0, 2, 3, 4, 1)).reshape(
                batch_size, -1, features.shape[1])

            anchor, target = self.sample_anchor(feats, i_label, n_view, rng)
            text_embedding_label = np.tile(np.arange(16, dtype=np.int64), self.prompt_num)
            if anchor is None:
                # No non-ignore voxel classes at this scale: text embeddings only
                # (the reference would crash here; never triggered in practice).
                anchor, target = text_embedding, text_embedding_label
            else:
                anchor = np.concatenate([anchor, text_embedding], axis=0)
                target = np.concatenate([target, text_embedding_label], axis=0)

            loss = loss + contrastive_loss_pallas(anchor, target)
        return loss


# ----------------------------------------------------------------------------
# Demo
# ----------------------------------------------------------------------------
if __name__ == "__main__":
    B = 7          # 6 labeled + 1 pseudo-labeled volume (forward slices label[:6]/label[6:])
    C = 32         # embedding / channel dim
    NUM_CLASSES = 4
    PROMPT_NUM = 2
    SAMPLE_NUM = 2  # -> n_view per level = [8, 4, 2]

    key = jax.random.PRNGKey(0)
    ks = jax.random.split(key, 8)

    # NCDHW layout on the host, like PyTorch.
    label = np.asarray(jax.random.randint(ks[0], (B, 1, 8, 8, 8), 0, NUM_CLASSES),
                       dtype=np.int64)
    entropy_map = np.asarray(jax.random.uniform(ks[1], (B - 6, 1, 8, 8, 8)),
                             dtype=np.float32)
    threshold = 0.5

    features_embedding_all = [
        np.asarray(jax.random.normal(ks[2], (B, C, 8, 8, 8)), dtype=np.float32),
        np.asarray(jax.random.normal(ks[3], (B, C, 4, 4, 4)), dtype=np.float32),
        np.asarray(jax.random.normal(ks[4], (B, C, 2, 2, 2)), dtype=np.float32),
    ]
    text_embedding_all = [
        np.asarray(jax.random.normal(ks[5], (16 * PROMPT_NUM, C)), dtype=np.float32),
        np.asarray(jax.random.normal(ks[6], (16 * PROMPT_NUM, C)), dtype=np.float32),
        np.asarray(jax.random.normal(ks[7], (16 * PROMPT_NUM, C)), dtype=np.float32),
    ]

    module = ContrastiveLossPallas(ignore_index=-1, prompt_num=PROMPT_NUM)
    loss = module.forward(features_embedding_all, label, text_embedding_all,
                          entropy_map, threshold, sample_num=SAMPLE_NUM,
                          rng=np.random.RandomState(0))
    loss = jax.block_until_ready(loss)
    assert np.isfinite(np.asarray(loss)), f"loss is not finite: {loss}"
    print("KERNEL_OK")
</pallas_src>

<mosaic_0001>
module attributes {stable_mosaic.version = 11 : i64} {
  func.func @_normalize_kernel(%arg0: i32, %arg1: memref<128x32xf32, #tpu.memory_space<vmem>>, %arg2: memref<128x32xbf16, #tpu.memory_space<vmem>>) attributes {dimension_semantics = [#tpu.dimension_semantics<parallel>], iteration_bounds = array<i64: 2>, scalar_prefetch = 0 : i64, scratch_operands = 0 : i64, tpu.core_type = #tpu.core_type<tc>, window_params = [{transform_indices = @transform_0, window_bounds = array<i64: 128, 32>}, {transform_indices = @transform_1, window_bounds = array<i64: 128, 32>}]} {
    %c0 = arith.constant 0 : index
    %c0_0 = arith.constant 0 : index
    %0 = vector.load %arg1[%c0, %c0_0] : memref<128x32xf32, #tpu.memory_space<vmem>>, vector<128x32xf32>
    %1 = arith.mulf %0, %0 : vector<128x32xf32>
    %cst = arith.constant dense<0.000000e+00> : vector<128xf32>
    %2 = vector.multi_reduction <add>, %1, %cst [1] : vector<128x32xf32> to vector<128xf32>
    %3 = vector.shape_cast %2 : vector<128xf32> to vector<128x1xf32>
    %cst_1 = arith.constant 1.000000e-24 : f32
    %4 = vector.broadcast %cst_1 : f32 to vector<128x1xf32>
    %5 = arith.maximumf %3, %4 : vector<128x1xf32>
    %6 = math.rsqrt %5 : vector<128x1xf32>
    %7 = vector.broadcast %6 : vector<128x1xf32> to vector<128x32xf32>
    %8 = arith.mulf %0, %7 : vector<128x32xf32>
    %9 = arith.truncf %8 : vector<128x32xf32> to vector<128x32xbf16>
    %c0_2 = arith.constant 0 : index
    %c0_3 = arith.constant 0 : index
    %10 = vector.load %arg2[%c0_2, %c0_3] : memref<128x32xbf16, #tpu.memory_space<vmem>>, vector<128x32xbf16>
    tpu.vector_store %arg2[%c0_2, %c0_3], %9 {strides = array<i32>} : memref<128x32xbf16, #tpu.memory_space<vmem>>, vector<128x32xbf16>,
    return
  }
  func.func @transform_0(%arg0: i32) -> (i32, i32) {
    %c0_i32 = arith.constant 0 : i32
    %c0_i32_0 = arith.constant 0 : i32
    return %arg0, %c0_i32 : i32, i32
  }
  func.func @transform_1(%arg0: i32) -> (i32, i32) {
    %c0_i32 = arith.constant 0 : i32
    %c0_i32_0 = arith.constant 0 : i32
    return %arg0, %c0_i32 : i32, i32
  }
}

</mosaic_0001>

<llo_original>
// kernel: tpu_custom_call.1
$region0: #{tpu_custom_call.1}
  #allocation0 [shape = 'u32[]', space=smem, size = 0x4, offset = 0x4, fixed_abs, tag = 'smem constant byte address 0x4 - core index']
  #allocation1 [shape = 'u32[144,128]{1,0:T(1,128)}', space=vmem, size = 0x12000, scoped, tag = 'internal scratch']
  %s0 = inlined_call_operand.vmem [shape: f32[256,32], index: 0, kind: input, shape index: {}]
  %s1 = inlined_call_operand.vmem [shape: bf16[256,32], index: 1, kind: output, shape index: {}]
  %s2 = sld [smem:[#allocation0]]
  $region37: #{tpu_custom_call.1} parent=0
    _
  %s4 = ssub.s32 1, %s2
  %s5 = scalar_select 0, %s4, %s2
  loop: start=0, step=1, limit=4
  $region2: #{tpu_custom_call.1} parent=0 // loop_pre_header
    _
  $region3: #{tpu_custom_call.1} parent=0 // loop_header
    %s7 = sphi 0, %s11
    %p8 = scmp.ge.s32.totalorder %s7, 4
    %s17 = sphi 0, %s19
    %s20 = sphi 0, %s17
    %s21 = sphi 0, %s20
    %s37 = sphi 0, %s21
    %s43 = sphi 0, %s45
    %s46 = sphi 0, %s43
    %s47 = sphi 0, %s46
    %s63 = sphi 0, %s47
  $region4: #{tpu_custom_call.1} parent=0 // loop_header_branch
    %10 = sbr.rel (%p8) target = $region8
  $region5: #{tpu_custom_call.1} parent=0 // loop_body
    %s12 = ssub.s32 %s7, 1
    %s13 = ssub.s32 %s7, 2
    %s14 = sadd.s32 %s7, 1
    %s15 = ssub.s32 %s7, %s14
    %p16 = scmp.eq.s32.totalorder %s15, 0
    %s18 = sadd.s32 %s17, 1
    %s19 = scalar_select %p16, %s17, %s18
    %p22 = pneg %p16
    %p23 = scmp.eq.s32.totalorder %s7, 1
    %p24 = por %p22, %p23
    %p25 = scmp.ne.s32.totalorder %s17, %s20
    %p26 = scmp.eq.s32.totalorder %s7, 0
    %p27 = por %p25, %p26
    %p28 = scmp.ne.s32.totalorder %s17, %s20
    %p29 = scmp.eq.s32.totalorder %s12, 1
    %p30 = por %p28, %p29
    %p31 = scmp.ne.s32.totalorder %s20, %s21
    %p32 = scmp.eq.s32.totalorder %s12, 0
    %p33 = por %p31, %p32
    %p34 = scmp.ne.s32.totalorder %s20, %s21
    %p35 = scmp.eq.s32.totalorder %s13, 1
    %p36 = por %p34, %p35
    %p38 = scmp.ne.s32.totalorder %s21, %s37
    %p39 = scmp.eq.s32.totalorder %s13, 0
    %p40 = por %p38, %p39
    %s41 = ssub.s32 %s7, %s14
    %p42 = scmp.eq.s32.totalorder %s41, 0
    %s44 = sadd.s32 %s43, 1
    %s45 = scalar_select %p42, %s43, %s44
    %p48 = pneg %p42
    %p49 = scmp.eq.s32.totalorder %s7, 1
    %p50 = por %p48, %p49
    %p51 = scmp.ne.s32.totalorder %s43, %s46
    %p52 = scmp.eq.s32.totalorder %s7, 0
    %p53 = por %p51, %p52
    %p54 = scmp.ne.s32.totalorder %s43, %s46
    %p55 = scmp.eq.s32.totalorder %s12, 1
    %p56 = por %p54, %p55
    %p57 = scmp.ne.s32.totalorder %s46, %s47
    %p58 = scmp.eq.s32.totalorder %s12, 0
    %p59 = por %p57, %p58
    %p60 = scmp.ne.s32.totalorder %s46, %s47
    %p61 = scmp.eq.s32.totalorder %s13, 1
    %p62 = por %p60, %p61
    %p64 = scmp.ne.s32.totalorder %s47, %s63
    %p65 = scmp.eq.s32.totalorder %s13, 0
    %p66 = por %p64, %p65
    %p67 = scmp.le.s32.totalorder 1, %s7
    %p68 = scmp.lt.s32.totalorder %s7, 3
    %p69 = pnand %p67, %p68
    %p70 = pneg %p69
    // Predicated region
    $region9: #{tpu_custom_call.1} parent=5 // pred_check
      _
    $region10: #{tpu_custom_call.1} parent=5 // pred_check_branch
      %72 = sbr.rel (%p69) target = $region12
    $region11: #{tpu_custom_call.1} parent=5 // pred_region
      %s73 = ssub.s32 %s7, 1
    $region12: #{tpu_custom_call.1} parent=5 // pred_fallthru
      _
    %p74 = scmp.lt.s32.totalorder %s7, 2
    // Predicated region
    $region13: #{tpu_custom_call.1} parent=5 // pred_check
      %p75 = pneg %p74
    $region14: #{tpu_custom_call.1} parent=5 // pred_check_branch
      %77 = sbr.rel (%p75) target = $region16
    $region15: #{tpu_custom_call.1} parent=5 // pred_region
      // Predicated region
      $region17: #{tpu_custom_call.1} parent=15 // pred_check
        %p78 = pneg %p27
      $region18: #{tpu_custom_call.1} parent=15 // pred_check_branch
        %80 = sbr.rel (%p78) target = $region20
      $region19: #{tpu_custom_call.1} parent=15 // pred_region
        %s81 = smul.u32 16, %s7
        %p82 = scmp.lt.s32.totalorder %s81, 31
        %s83 = scalar_select %p82, %s81, 31
        %s84 = smul.addr %s83, 8
        %s85 = scalar_lea.vmem %s0, %s84
        %s86 = smul.u32 16, %s7
      $region20: #{tpu_custom_call.1} parent=15 // pred_fallthru
        _
    $region16: #{tpu_custom_call.1} parent=5 // pred_fallthru
      _
    %p87 = scmp.le.s32.totalorder 1, %s7
    %p88 = scmp.lt.s32.totalorder %s7, 3
    %p89 = pnand %p87, %p88
    %p90 = pneg %p89
    // Predicated region
    $region21: #{tpu_custom_call.1} parent=5 // pred_check
      _
    $region22: #{tpu_custom_call.1} parent=5 // pred_check_branch
      %92 = sbr.rel (%p89) target = $region24
    $region23: #{tpu_custom_call.1} parent=5 // pred_region
      %s93 = ssub.s32 %s7, 1
      %s94 = smul.u32 16, %s12
      %p95 = scmp.lt.s32.totalorder %s94, 31
      %s96 = scalar_select %p95, %s94, 31
      %s97 = smul.addr %s96, 8
      %s98 = scalar_lea.vmem %s0, %s97
      %p99 = pneg %p33
      %p100 = pneg %p30
      %p101 = pneg %p59
      %p102 = pneg %p56
      %s103 = smul.u32 16, %s12
      %p104 = scmp.lt.s32.totalorder %s103, 31
      %s105 = scalar_select %p104, %s103, 31
      %s106 = smul.addr %s105, 4
      %s107 = scalar_lea.vmem %s1, %s106
      %s108 = smul.u32 16, %s12
      %p109 = scmp.lt.s32.totalorder %s108, 31
      %s110 = scalar_select %p109, %s108, 31
      %s111 = smul.addr %s110, 8
      %s112 = scalar_lea.vmem %s0, %s111
      %s113 = smul.u32 16, %s12
      %s114 = smul.u32 16, %s12
      %p115 = scmp.lt.s32.totalorder %s114, 31
      %s116 = scalar_select %p115, %s114, 31
      %s117 = smul.addr %s116, 4
      %s118 = scalar_lea.vmem %s1, %s117
      %s119 = smul.u32 16, %s12
      %v120 = vld [vmem:[%s112] sm:$0xff]
      %v121 = vld [vmem:[%s112 + $0x8] sm:$0xff]
      %v122 = vld [vmem:[%s112 + $0x10] sm:$0xff]
      %v123 = vld [vmem:[%s112 + $0x18] sm:$0xff]
      %v124 = vld [vmem:[%s112 + $0x20] sm:$0xff]
      %v125 = vld [vmem:[%s112 + $0x28] sm:$0xff]
      %v126 = vld [vmem:[%s112 + $0x30] sm:$0xff]
      %v127 = vld [vmem:[%s112 + $0x38] sm:$0xff]
      %v128 = vld [vmem:[%s112 + $0x40] sm:$0xff]
      %v129 = vld [vmem:[%s112 + $0x48] sm:$0xff]
      %v130 = vld [vmem:[%s112 + $0x50] sm:$0xff]
      %v131 = vld [vmem:[%s112 + $0x58] sm:$0xff]
      %v132 = vld [vmem:[%s112 + $0x60] sm:$0xff]
      %v133 = vld [vmem:[%s112 + $0x68] sm:$0xff]
      %v134 = vld [vmem:[%s112 + $0x70] sm:$0xff]
      %v135 = vld [vmem:[%s112 + $0x78] sm:$0xff]
      %v136 = vmul.f32 %v120, %v120
      %v137 = vmul.f32 %v121, %v121
      %v138 = vmul.f32 %v122, %v122
      %v139 = vmul.f32 %v123, %v123
      %v140 = vmul.f32 %v124, %v124
      %v141 = vmul.f32 %v125, %v125
      %v142 = vmul.f32 %v126, %v126
      %v143 = vmul.f32 %v127, %v127
      %v144 = vmul.f32 %v128, %v128
      %v145 = vmul.f32 %v129, %v129
      %v146 = vmul.f32 %v130, %v130
      %v147 = vmul.f32 %v131, %v131
      %v148 = vmul.f32 %v132, %v132
      %v149 = vmul.f32 %v133, %v133
      %v150 = vmul.f32 %v134, %v134
      %v151 = vmul.f32 %v135, %v135
      %vm152 = vcmask 261120
      %v153 = vsel %vm152, %v136, 0.0
      %154 = vadd.xlane.f32.xlu0 %v153
      %v155 = vpop.xlane.xlu0 %154
      %v156 = vsel %vm152, %v137, 0.0
      %157 = vadd.xlane.f32.xlu0 %v156
      %v158 = vpop.xlane.xlu0 %157
      %v159 = vsel %vm152, %v138, 0.0
      %160 = vadd.xlane.f32.xlu0 %v159
      %v161 = vpop.xlane.xlu0 %160
      %v162 = vsel %vm152, %v139, 0.0
      %163 = vadd.xlane.f32.xlu0 %v162
      %v164 = vpop.xlane.xlu0 %163
      %v165 = vsel %vm152, %v140, 0.0
      %166 = vadd.xlane.f32.xlu0 %v165
      %v167 = vpop.xlane.xlu0 %166
      %v168 = vsel %vm152, %v141, 0.0
      %169 = vadd.xlane.f32.xlu0 %v168
      %v170 = vpop.xlane.xlu0 %169
      %v171 = vsel %vm152, %v142, 0.0
      %172 = vadd.xlane.f32.xlu0 %v171
      %v173 = vpop.xlane.xlu0 %172
      %v174 = vsel %vm152, %v143, 0.0
      %175 = vadd.xlane.f32.xlu0 %v174
      %v176 = vpop.xlane.xlu0 %175
      %v177 = vsel %vm152, %v144, 0.0
      %178 = vadd.xlane.f32.xlu0 %v177
      %v179 = vpop.xlane.xlu0 %178
      %v180 = vsel %vm152, %v145, 0.0
      %181 = vadd.xlane.f32.xlu0 %v180
      %v182 = vpop.xlane.xlu0 %181
      %v183 = vsel %vm152, %v146, 0.0
      %184 = vadd.xlane.f32.xlu0 %v183
      %v185 = vpop.xlane.xlu0 %184
      %v186 = vsel %vm152, %v147, 0.0
      %187 = vadd.xlane.f32.xlu0 %v186
      %v188 = vpop.xlane.xlu0 %187
      %v189 = vsel %vm152, %v148, 0.0
      %190 = vadd.xlane.f32.xlu0 %v189
      %v191 = vpop.xlane.xlu0 %190
      %v192 = vsel %vm152, %v149, 0.0
      %193 = vadd.xlane.f32.xlu0 %v192
      %v194 = vpop.xlane.xlu0 %193
      %v195 = vsel %vm152, %v150, 0.0
      %196 = vadd.xlane.f32.xlu0 %v195
      %v197 = vpop.xlane.xlu0 %196
      %v198 = vsel %vm152, %v151, 0.0
      %199 = vadd.xlane.f32.xlu0 %v198
      %v200 = vpop.xlane.xlu0 %199
      %v201 = vmax.f32 %v155, 1e-24
      %v202 = vmax.f32 %v158, 1e-24
      %v203 = vmax.f32 %v161, 1e-24
      %v204 = vmax.f32 %v164, 1e-24
      %v205 = vmax.f32 %v167, 1e-24
      %v206 = vmax.f32 %v170, 1e-24
      %v207 = vmax.f32 %v173, 1e-24
      %v208 = vmax.f32 %v176, 1e-24
      %v209 = vmax.f32 %v179, 1e-24
      %v210 = vmax.f32 %v182, 1e-24
      %v211 = vmax.f32 %v185, 1e-24
      %v212 = vmax.f32 %v188, 1e-24
      %v213 = vmax.f32 %v191, 1e-24
      %v214 = vmax.f32 %v194, 1e-24
      %v215 = vmax.f32 %v197, 1e-24
      %v216 = vmax.f32 %v200, 1e-24
      %v217 = vrsqrt.pop %v201
      %v218 = vrsqrt.pop %v202
      %v219 = vrsqrt.pop %v203
      %v220 = vrsqrt.pop %v204
      %v221 = vrsqrt.pop %v205
      %v222 = vrsqrt.pop %v206
      %v223 = vrsqrt.pop %v207
      %v224 = vrsqrt.pop %v208
      %v225 = vrsqrt.pop %v209
      %v226 = vrsqrt.pop %v210
      %v227 = vrsqrt.pop %v211
      %v228 = vrsqrt.pop %v212
      %v229 = vrsqrt.pop %v213
      %v230 = vrsqrt.pop %v214
      %v231 = vrsqrt.pop %v215
      %v232 = vrsqrt.pop %v216
      %v233 = vmul.f32 %v120, %v217
      %v234 = vmul.f32 %v121, %v218
      %v235 = vmul.f32 %v122, %v219
      %v236 = vmul.f32 %v123, %v220
      %v237 = vmul.f32 %v124, %v221
      %v238 = vmul.f32 %v125, %v222
      %v239 = vmul.f32 %v126, %v223
      %v240 = vmul.f32 %v127, %v224
      %v241 = vmul.f32 %v128, %v225
      %v242 = vmul.f32 %v129, %v226
      %v243 = vmul.f32 %v130, %v227
      %v244 = vmul.f32 %v131, %v228
      %v245 = vmul.f32 %v132, %v229
      %v246 = vmul.f32 %v133, %v230
      %v247 = vmul.f32 %v134, %v231
      %v248 = vmul.f32 %v135, %v232
      %v249 = vpack.c.bf16 %v234, %v233
      %v250 = vpack.c.bf16 %v236, %v235
      %v251 = vpack.c.bf16 %v238, %v237
      %v252 = vpack.c.bf16 %v240, %v239
      %v253 = vpack.c.bf16 %v242, %v241
      %v254 = vpack.c.bf16 %v244, %v243
      %v255 = vpack.c.bf16 %v246, %v245
      %v256 = vpack.c.bf16 %v248, %v247
      %v265 = vunpack.c.l.b16 %v249
      %v266 = vunpack.c.h.b16 %v249
      %v267 = vunpack.c.l.b16 %v250
      %v268 = vunpack.c.h.b16 %v250
      %v269 = vunpack.c.l.b16 %v251
      %v270 = vunpack.c.h.b16 %v251
      %v271 = vunpack.c.l.b16 %v252
      %v272 = vunpack.c.h.b16 %v252
      %v273 = vunpack.c.l.b16 %v253
      %v274 = vunpack.c.h.b16 %v253
      %v275 = vunpack.c.l.b16 %v254
      %v276 = vunpack.c.h.b16 %v254
      %v277 = vunpack.c.l.b16 %v255
      %v278 = vunpack.c.h.b16 %v255
      %v279 = vunpack.c.l.b16 %v256
      %v280 = vunpack.c.h.b16 %v256
      %v281 = vpack.c.b16 %v265, %v265
      %v282 = vpack.c.b16 %v266, %v266
      %v283 = vpack.c.b16 %v267, %v267
      %v284 = vpack.c.b16 %v268, %v268
      %v285 = vpack.c.b16 %v269, %v269
      %v286 = vpack.c.b16 %v270, %v270
      %v287 = vpack.c.b16 %v271, %v271
      %v288 = vpack.c.b16 %v272, %v272
      %v289 = vpack.c.b16 %v273, %v273
      %v290 = vpack.c.b16 %v274, %v274
      %v291 = vpack.c.b16 %v275, %v275
      %v292 = vpack.c.b16 %v276, %v276
      %v293 = vpack.c.b16 %v277, %v277
      %v294 = vpack.c.b16 %v278, %v278
      %v295 = vpack.c.b16 %v279, %v279
      %v296 = vpack.c.b16 %v280, %v280
      %vm313 = vcmask 257024
      %314 = vst.msk [vmem:[%s118] sm:$0xf] %vm313, %v281
      %315 = vst.msk [vmem:[%s118 + $0x4] sm:$0xf] %vm313, %v282
      %316 = vst.msk [vmem:[%s118 + $0x8] sm:$0xf] %vm313, %v283
      %317 = vst.msk [vmem:[%s118 + $0xc] sm:$0xf] %vm313, %v284
      %318 = vst.msk [vmem:[%s118 + $0x10] sm:$0xf] %vm313, %v285
      %319 = vst.msk [vmem:[%s118 + $0x14] sm:$0xf] %vm313, %v286
      %320 = vst.msk [vmem:[%s118 + $0x18] sm:$0xf] %vm313, %v287
      %321 = vst.msk [vmem:[%s118 + $0x1c] sm:$0xf] %vm313, %v288
      %322 = vst.msk [vmem:[%s118 + $0x20] sm:$0xf] %vm313, %v289
      %323 = vst.msk [vmem:[%s118 + $0x24] sm:$0xf] %vm313, %v290
      %324 = vst.msk [vmem:[%s118 + $0x28] sm:$0xf] %vm313, %v291
      %325 = vst.msk [vmem:[%s118 + $0x2c] sm:$0xf] %vm313, %v292
      %326 = vst.msk [vmem:[%s118 + $0x30] sm:$0xf] %vm313, %v293
      %327 = vst.msk [vmem:[%s118 + $0x34] sm:$0xf] %vm313, %v294
      %328 = vst.msk [vmem:[%s118 + $0x38] sm:$0xf] %vm313, %v295
      %329 = vst.msk [vmem:[%s118 + $0x3c] sm:$0xf] %vm313, %v296
      %s330 = smul.u32 16, %s12
      %p331 = scmp.lt.s32.totalorder %s330, 31
      %s332 = scalar_select %p331, %s330, 31
      %s333 = smul.addr %s332, 4
      %s334 = scalar_lea.vmem %s1, %s333
      // Predicated region
      $region25: #{tpu_custom_call.1} parent=23 // pred_check
        %p335 = pneg %p56
      $region26: #{tpu_custom_call.1} parent=23 // pred_check_branch
        %337 = sbr.rel (%p335) target = $region28
      $region27: #{tpu_custom_call.1} parent=23 // pred_region
        %s338 = smul.u32 16, %s12
      $region28: #{tpu_custom_call.1} parent=23 // pred_fallthru
        _
    $region24: #{tpu_custom_call.1} parent=5 // pred_fallthru
      _
    %p339 = scmp.le.s32.totalorder 2, %s7
    // Predicated region
    $region29: #{tpu_custom_call.1} parent=5 // pred_check
      %p340 = pneg %p339
    $region30: #{tpu_custom_call.1} parent=5 // pred_check_branch
      %342 = sbr.rel (%p340) target = $region32
    $region31: #{tpu_custom_call.1} parent=5 // pred_region
      %s343 = ssub.s32 %s7, 2
      // Predicated region
      $region33: #{tpu_custom_call.1} parent=31 // pred_check
        %p344 = pneg %p62
      $region34: #{tpu_custom_call.1} parent=31 // pred_check_branch
        %346 = sbr.rel (%p344) target = $region36
      $region35: #{tpu_custom_call.1} parent=31 // pred_region
        %s347 = smul.u32 16, %s13
        %p348 = scmp.lt.s32.totalorder %s347, 31
        %s349 = scalar_select %p348, %s347, 31
        %s350 = smul.addr %s349, 4
        %s351 = scalar_lea.vmem %s1, %s350
      $region36: #{tpu_custom_call.1} parent=31 // pred_fallthru
        _
    $region32: #{tpu_custom_call.1} parent=5 // pred_fallthru
      _
  $region6: #{tpu_custom_call.1} parent=0 // loop_footer
    %s11 = sadd.s32 1, %s7
  $region7: #{tpu_custom_call.1} parent=0 // loop_footer_branch
    %6 = sbr.rel target = $region3
  $region8: #{tpu_custom_call.1} parent=0 // loop_exit
    _

</llo_original>
